<compile_context>
chip_gen: v6e
topology: v6e:2x2x1
jax: 0.10.0
libtpu: 0.0.40
codegen_flags: <defaults>
</compile_context>

<pallas_src>
import math
from functools import partial

import jax
import jax.numpy as jnp
from jax.experimental import pallas as pl
from jax.experimental.pallas import tpu as pltpu


_SQRT_2_INV = 1.0 / math.sqrt(2.0)


def _round_up(x, m):
    return ((x + m - 1) // m) * m


def _gelu(x, approximate):
    if approximate:
        # tanh-approx GELU: tanh lowers to the EUP slot (separate from VALU).
        return jax.nn.gelu(x, approximate=True)
    # exact erf GELU (nn.GELU() default): long VPU polynomial, VALU-heavy.
    return 0.5 * x * (1.0 + jax.lax.erf(x * _SQRT_2_INV))


# ----------------------------------------------------------------------------
# Kernels
# ----------------------------------------------------------------------------
def _mlp_kernel_resident(x_ref, w1_ref, b1_ref, w2_ref, b2_ref, o_ref, *,
                         approx_gelu):
    """Weights fully VMEM-resident; 1-D grid over row tiles."""
    # (tm, C) @ (C, H) with f32 MXU accumulation.
    h = jnp.dot(x_ref[...], w1_ref[...], preferred_element_type=jnp.float32)
    # bias-add + GELU in the elementwise dtype carried by b1 (bf16 on v6e/v7x).
    h = _gelu(h.astype(b1_ref.dtype) + b1_ref[...], approx_gelu)
    # (tm, H) @ (H, C) with f32 MXU accumulation; add b2 (f32) and cast out.
    y = jnp.dot(h.astype(w2_ref.dtype), w2_ref[...],
                preferred_element_type=jnp.float32)
    o_ref[...] = (y + b2_ref[...]).astype(o_ref.dtype)


def _mlp_kernel_chunked(x_ref, w1_ref, b1_ref, w2_ref, b2_ref, o_ref, acc_ref, *,
                        approx_gelu):
    """H-chunked path: grid = (row tiles, hidden chunks); accumulate over k."""
    k = pl.program_id(1)

    @pl.when(k == 0)
    def _():
        # Initialise the accumulator with b2 -> no epilogue (tm, C) add.
        acc_ref[...] = jnp.broadcast_to(b2_ref[...], acc_ref.shape).astype(
            acc_ref.dtype)

    h = jnp.dot(x_ref[...], w1_ref[...], preferred_element_type=jnp.float32)
    h = _gelu(h.astype(b1_ref.dtype) + b1_ref[...], approx_gelu)
    acc_ref[...] += jnp.dot(h.astype(w2_ref.dtype), w2_ref[...],
                            preferred_element_type=jnp.float32)

    @pl.when(k == pl.num_programs(1) - 1)
    def _():
        o_ref[...] = acc_ref[...].astype(o_ref.dtype)


# ----------------------------------------------------------------------------
# Device heuristics
# ----------------------------------------------------------------------------
def _device_kind():
    try:
        return jax.devices()[0].device_kind.lower()
    except Exception:
        return ""


def _physical_vmem_bytes(kind):
    if "v7" in kind:
        return 64 * 1024 * 1024      # per TensorCore on v7x
    return 128 * 1024 * 1024         # v5e / v6e


def _elementwise_dtype(kind):
    # v6e / v7x have bf16 VPU/EUP; older gens would just insert converts.
    if "v6" in kind or "v7" in kind:
        return jnp.bfloat16
    return jnp.float32


# ----------------------------------------------------------------------------
# Parameter preparation (run ONCE, outside the hot path)
# ----------------------------------------------------------------------------
def prepare_params(w1, b1, w2, b2, *, ew_dtype=None):
    """Cast weights to bf16, biases to their compute dtypes, pad H to a
    multiple of 256 (padded w2 rows are zero -> padding contributes nothing)."""
    if ew_dtype is None:
        ew_dtype = _elementwise_dtype(_device_kind())
    C, H = w1.shape
    Hp = _round_up(H, 256)
    w1p = w1.astype(jnp.bfloat16)
    w2p = w2.astype(jnp.bfloat16)
    b1p = b1.astype(ew_dtype).reshape(1, H)
    b2p = b2.astype(jnp.float32).reshape(1, C)
    if Hp != H:
        w1p = jnp.pad(w1p, ((0, 0), (0, Hp - H)))
        b1p = jnp.pad(b1p, ((0, 0), (0, Hp - H)))
        w2p = jnp.pad(w2p, ((0, Hp - H), (0, 0)))
    return w1p, b1p, w2p, b2p


# ----------------------------------------------------------------------------
# Forward wrapper
# ----------------------------------------------------------------------------
def mlp_forward(x, w1, b1, w2, b2, *, approx_gelu=True, tm_target=512):
    """x: (B, T, C).  Params ideally pre-processed by prepare_params (bf16
    weights, H padded to a 256 multiple); raw f32 params are also accepted."""
    B, T, C = x.shape
    M = B * T
    out_dtype = x.dtype
    out_isz = jnp.dtype(out_dtype).itemsize
    bf16_isz = 2

    kind = _device_kind()
    ew_dtype = _elementwise_dtype(kind)
    ew_isz = jnp.dtype(ew_dtype).itemsize
    phys_vmem = _physical_vmem_bytes(kind)
    budget = int(0.60 * phys_vmem)           # leave headroom for compiler scratch

    # Prepare on-the-fly only if the caller passed raw / unpadded params.
    if (w1.dtype != jnp.bfloat16 or w2.dtype != jnp.bfloat16
            or b1.ndim != 2 or (w1.shape[1] % 256) != 0):
        w1, b1, w2, b2 = prepare_params(w1, b1, w2, b2, ew_dtype=ew_dtype)
    Hp = w1.shape[1]
    ew_isz = jnp.dtype(b1.dtype).itemsize    # honour whatever the params carry

    # --- footprint models (bytes) ------------------------------------------
    def resident_bytes(tm):
        return (2 * (w1.size + w2.size) * bf16_isz   # weights (worst case: 2 bufs)
                + Hp * ew_isz + C * 4                # biases
                + 2 * tm * C * bf16_isz              # x tile, double-buffered
                + 2 * tm * C * out_isz               # out tile, double-buffered
                + tm * Hp * (4 + ew_isz))            # live hidden intermediate

    def chunked_bytes(tm, hk):
        return (2 * 2 * C * hk * bf16_isz            # w1 / w2 chunks, d-buffered
                + 2 * hk * ew_isz + C * 4            # bias chunks
                + 2 * tm * C * bf16_isz              # x tile, double-buffered
                + 2 * tm * C * out_isz               # out tile, double-buffered
                + tm * C * 4                         # f32 accumulator scratch
                + tm * hk * (4 + ew_isz))            # live hidden intermediate

    # --- tile / path selection ----------------------------------------------
    tm_cap = _round_up(M, 8)
    cand = sorted({min(t, tm_cap) for t in (tm_target, 512, 256, 128)},
                  reverse=True)

    use_resident, tm, hk = False, cand[-1], None
    for t in cand:
        if resident_bytes(t) <= budget:
            use_resident, tm = True, t
            break
    if not use_resident:
        hk = 512 if Hp % 512 == 0 else 256           # 256-multiples for v6e/v7x MXU
        tm = cand[-1]
        for t in cand:
            if chunked_bytes(t, hk) <= budget:
                tm = t
                break

    needed = resident_bytes(tm) if use_resident else chunked_bytes(tm, hk)
    vmem_limit = max(32 * 1024 * 1024, int(1.5 * needed))
    vmem_limit = min(vmem_limit, int(0.85 * phys_vmem))   # clamp to physical (v7x!)

    # --- operand prep --------------------------------------------------------
    Mp = _round_up(M, tm)
    x2d = x.reshape(M, C)
    if x2d.dtype != jnp.bfloat16:
        x2d = x2d.astype(jnp.bfloat16)
    if Mp != M:
        x2d = jnp.pad(x2d, ((0, Mp - M), (0, 0)))

    flops = 4 * M * C * Hp
    if use_resident:
        bytes_accessed = (x2d.size * bf16_isz + (w1.size + w2.size) * bf16_isz
                          + b1.size * ew_isz + b2.size * 4 + M * C * out_isz)
    else:
        n_row_tiles = Mp // tm
        bytes_accessed = (x2d.size * bf16_isz
                          + n_row_tiles * (w1.size + w2.size) * bf16_isz
                          + b1.size * ew_isz + b2.size * 4 + M * C * out_isz)
    cost = pl.CostEstimate(flops=int(flops), transcendentals=int(M * Hp),
                           bytes_accessed=int(bytes_accessed))

    if use_resident:
        out2d = pl.pallas_call(
            partial(_mlp_kernel_resident, approx_gelu=approx_gelu),
            out_shape=jax.ShapeDtypeStruct((Mp, C), out_dtype),
            grid_spec=pltpu.PrefetchScalarGridSpec(
                num_scalar_prefetch=0,
                grid=(Mp // tm,),
                in_specs=[
                    pl.BlockSpec((tm, C), lambda i: (i, 0)),   # x row tile
                    pl.BlockSpec((C, Hp), lambda i: (0, 0)),   # w1 (VMEM-resident)
                    pl.BlockSpec((1, Hp), lambda i: (0, 0)),   # b1
                    pl.BlockSpec((Hp, C), lambda i: (0, 0)),   # w2 (VMEM-resident)
                    pl.BlockSpec((1, C), lambda i: (0, 0)),    # b2
                ],
                out_specs=pl.BlockSpec((tm, C), lambda i: (i, 0)),
            ),
            compiler_params=pltpu.CompilerParams(
                dimension_semantics=("parallel",),
                vmem_limit_bytes=vmem_limit,
            ),
            cost_estimate=cost,
        )(x2d, w1, b1, w2, b2)
    else:
        out2d = pl.pallas_call(
            partial(_mlp_kernel_chunked, approx_gelu=approx_gelu),
            out_shape=jax.ShapeDtypeStruct((Mp, C), out_dtype),
            grid_spec=pltpu.PrefetchScalarGridSpec(
                num_scalar_prefetch=0,
                grid=(Mp // tm, Hp // hk),                     # reduction axis last
                in_specs=[
                    pl.BlockSpec((tm, C), lambda i, k: (i, 0)),   # x row tile
                    pl.BlockSpec((C, hk), lambda i, k: (0, k)),   # w1 column chunk
                    pl.BlockSpec((1, hk), lambda i, k: (0, k)),   # b1 chunk
                    pl.BlockSpec((hk, C), lambda i, k: (k, 0)),   # w2 row chunk
                    pl.BlockSpec((1, C), lambda i, k: (0, 0)),    # b2
                ],
                out_specs=pl.BlockSpec((tm, C), lambda i, k: (i, 0)),
                scratch_shapes=[pltpu.VMEM((tm, C), jnp.float32)],
            ),
            compiler_params=pltpu.CompilerParams(
                dimension_semantics=("parallel", "arbitrary"),
                vmem_limit_bytes=vmem_limit,
            ),
            cost_estimate=cost,
        )(x2d, w1, b1, w2, b2)

    if Mp != M:
        out2d = out2d[:M]
    return out2d.reshape(B, T, C)


def init_params(key, n_embd):
    """Deterministic init mimicking nn.Linear defaults: U(-1/sqrt(fan_in), ...)."""
    hidden = 4 * n_embd
    k1, k2, k3, k4 = jax.random.split(key, 4)
    bound1 = 1.0 / math.sqrt(n_embd)
    bound2 = 1.0 / math.sqrt(hidden)
    w1 = jax.random.uniform(k1, (n_embd, hidden), jnp.float32, -bound1, bound1)
    b1 = jax.random.uniform(k2, (hidden,), jnp.float32, -bound1, bound1)
    w2 = jax.random.uniform(k3, (hidden, n_embd), jnp.float32, -bound2, bound2)
    b2 = jax.random.uniform(k4, (n_embd,), jnp.float32, -bound2, bound2)
    return w1, b1, w2, b2


if __name__ == "__main__":
    key = jax.random.PRNGKey(0)
    k_x, k_p = jax.random.split(key)

    B, T, n_embd = 2, 8, 32          # small shapes consistent with the module
    x = jax.random.normal(k_x, (B, T, n_embd), dtype=jnp.float32)
    w1, b1, w2, b2 = init_params(k_p, n_embd)

    # Cast / pad parameters once, outside the per-call hot path.
    params = prepare_params(w1, b1, w2, b2)

    out = mlp_forward(x, *params)
    out = jax.block_until_ready(out)

    # Reference mirroring the kernel's numerics: bf16 matmul operands with f32
    # accumulation, bias-add/GELU in the device elementwise dtype, tanh GELU.
    ew = _elementwise_dtype(_device_kind())
    xb = x.reshape(-1, n_embd).astype(jnp.bfloat16)
    w1b = w1.astype(jnp.bfloat16)
    w2b = w2.astype(jnp.bfloat16)
    h_ref = (jnp.dot(xb, w1b, preferred_element_type=jnp.float32).astype(ew)
             + b1.astype(ew))
    h_ref = jax.nn.gelu(h_ref, approximate=True)
    y_ref = (jnp.dot(h_ref.astype(jnp.bfloat16), w2b,
                     preferred_element_type=jnp.float32) + b2)
    y_ref = y_ref.reshape(B, T, n_embd)
    assert jnp.allclose(out, y_ref.astype(out.dtype), atol=2e-2, rtol=2e-2), \
        "mismatch vs reference"

    print("KERNEL_OK")
</pallas_src>

<mosaic_0001>
module attributes {stable_mosaic.version = 11 : i64} {
  func.func @_mlp_kernel_resident(%arg0: i32, %arg1: memref<16x32xbf16, #tpu.memory_space<vmem>>, %arg2: memref<32x256xbf16, #tpu.memory_space<vmem>>, %arg3: memref<1x256xf32, #tpu.memory_space<vmem>>, %arg4: memref<256x32xbf16, #tpu.memory_space<vmem>>, %arg5: memref<1x32xf32, #tpu.memory_space<vmem>>, %arg6: memref<16x32xf32, #tpu.memory_space<vmem>>) attributes {dimension_semantics = [#tpu.dimension_semantics<parallel>], iteration_bounds = array<i64: 1>, scalar_prefetch = 0 : i64, scratch_operands = 0 : i64, tpu.core_type = #tpu.core_type<tc>, window_params = [{transform_indices = @transform_0, window_bounds = array<i64: 16, 32>}, {pipeline_mode = #tpu.pipeline_mode<synchronous>, transform_indices = @transform_1, window_bounds = array<i64: 32, 256>}, {pipeline_mode = #tpu.pipeline_mode<synchronous>, transform_indices = @transform_2, window_bounds = array<i64: 1, 256>}, {pipeline_mode = #tpu.pipeline_mode<synchronous>, transform_indices = @transform_3, window_bounds = array<i64: 256, 32>}, {pipeline_mode = #tpu.pipeline_mode<synchronous>, transform_indices = @transform_4, window_bounds = array<i64: 1, 32>}, {transform_indices = @transform_5, window_bounds = array<i64: 16, 32>}]} {
    %c0 = arith.constant 0 : index
    %c0_0 = arith.constant 0 : index
    %0 = vector.load %arg1[%c0, %c0_0] : memref<16x32xbf16, #tpu.memory_space<vmem>>, vector<16x32xbf16>
    %c0_1 = arith.constant 0 : index
    %c0_2 = arith.constant 0 : index
    %1 = vector.load %arg2[%c0_1, %c0_2] : memref<32x256xbf16, #tpu.memory_space<vmem>>, vector<32x256xbf16>
    %cst = arith.constant dense<0.000000e+00> : vector<16x256xf32>
    %2 = tpu.matmul %0, %1, %cst {dimension_numbers = #tpu.dot_dimension_numbers<[1], [0], [0], [1], [0, 0, 1, 1], [], []>} : vector<16x32xbf16>, vector<32x256xbf16>, vector<16x256xf32> -> vector<16x256xf32>
    %c0_3 = arith.constant 0 : index
    %c0_4 = arith.constant 0 : index
    %3 = vector.load %arg3[%c0_3, %c0_4] : memref<1x256xf32, #tpu.memory_space<vmem>>, vector<1x256xf32>
    %4 = vector.broadcast %3 : vector<1x256xf32> to vector<16x256xf32>
    %5 = arith.addf %2, %4 : vector<16x256xf32>
    %6 = arith.mulf %5, %5 : vector<16x256xf32>
    %7 = arith.mulf %5, %6 : vector<16x256xf32>
    %cst_5 = arith.constant 4.471500e-02 : f32
    %8 = vector.broadcast %cst_5 : f32 to vector<16x256xf32>
    %9 = arith.mulf %8, %7 : vector<16x256xf32>
    %10 = arith.addf %5, %9 : vector<16x256xf32>
    %cst_6 = arith.constant 0.797884583 : f32
    %11 = vector.broadcast %cst_6 : f32 to vector<16x256xf32>
    %12 = arith.mulf %11, %10 : vector<16x256xf32>
    %13 = math.tanh %12 : vector<16x256xf32>
    %cst_7 = arith.constant 1.000000e+00 : f32
    %14 = vector.broadcast %cst_7 : f32 to vector<16x256xf32>
    %15 = arith.addf %14, %13 : vector<16x256xf32>
    %cst_8 = arith.constant 5.000000e-01 : f32
    %16 = vector.broadcast %cst_8 : f32 to vector<16x256xf32>
    %17 = arith.mulf %16, %15 : vector<16x256xf32>
    %18 = arith.mulf %5, %17 : vector<16x256xf32>
    %19 = arith.truncf %18 : vector<16x256xf32> to vector<16x256xbf16>
    %c0_9 = arith.constant 0 : index
    %c0_10 = arith.constant 0 : index
    %20 = vector.load %arg4[%c0_9, %c0_10] : memref<256x32xbf16, #tpu.memory_space<vmem>>, vector<256x32xbf16>
    %cst_11 = arith.constant dense<0.000000e+00> : vector<16x32xf32>
    %21 = tpu.matmul %19, %20, %cst_11 {dimension_numbers = #tpu.dot_dimension_numbers<[1], [0], [0], [1], [0, 0, 1, 1], [], []>} : vector<16x256xbf16>, vector<256x32xbf16>, vector<16x32xf32> -> vector<16x32xf32>
    %c0_12 = arith.constant 0 : index
    %c0_13 = arith.constant 0 : index
    %22 = vector.load %arg5[%c0_12, %c0_13] : memref<1x32xf32, #tpu.memory_space<vmem>>, vector<1x32xf32>
    %23 = vector.broadcast %22 : vector<1x32xf32> to vector<16x32xf32>
    %24 = arith.addf %21, %23 : vector<16x32xf32>
    %c0_14 = arith.constant 0 : index
    %c0_15 = arith.constant 0 : index
    %25 = vector.load %arg6[%c0_14, %c0_15] : memref<16x32xf32, #tpu.memory_space<vmem>>, vector<16x32xf32>
    tpu.vector_store %arg6[%c0_14, %c0_15], %24 {strides = array<i32>} : memref<16x32xf32, #tpu.memory_space<vmem>>, vector<16x32xf32>,
    return
  }
  func.func @transform_0(%arg0: i32) -> (i32, i32) {
    %c0_i32 = arith.constant 0 : i32
    %c0_i32_0 = arith.constant 0 : i32
    return %arg0, %c0_i32 : i32, i32
  }
  func.func @transform_1(%arg0: i32) -> (i32, i32) {
    %c0_i32 = arith.constant 0 : i32
    %c0_i32_0 = arith.constant 0 : i32
    %c0_i32_1 = arith.constant 0 : i32
    return %c0_i32, %c0_i32_0 : i32, i32
  }
  func.func @transform_2(%arg0: i32) -> (i32, i32) {
    %c0_i32 = arith.constant 0 : i32
    %c0_i32_0 = arith.constant 0 : i32
    %c0_i32_1 = arith.constant 0 : i32
    return %c0_i32, %c0_i32_0 : i32, i32
  }
  func.func @transform_3(%arg0: i32) -> (i32, i32) {
    %c0_i32 = arith.constant 0 : i32
    %c0_i32_0 = arith.constant 0 : i32
    %c0_i32_1 = arith.constant 0 : i32
    return %c0_i32, %c0_i32_0 : i32, i32
  }
  func.func @transform_4(%arg0: i32) -> (i32, i32) {
    %c0_i32 = arith.constant 0 : i32
    %c0_i32_0 = arith.constant 0 : i32
    %c0_i32_1 = arith.constant 0 : i32
    return %c0_i32, %c0_i32_0 : i32, i32
  }
  func.func @transform_5(%arg0: i32) -> (i32, i32) {
    %c0_i32 = arith.constant 0 : i32
    %c0_i32_0 = arith.constant 0 : i32
    return %arg0, %c0_i32 : i32, i32
  }
}

</mosaic_0001>

<llo_original>
// kernel: tpu_custom_call.1
$region0: #{tpu_custom_call.1}
  #allocation0 [shape = 'u32[]', space=smem, size = 0x4, offset = 0x4, fixed_abs, tag = 'smem constant byte address 0x4 - core index']
  #allocation1 [shape = 'u32[144,128]{1,0:T(1,128)}', space=vmem, size = 0x12000, scoped, tag = 'internal scratch']
  %s0 = inlined_call_operand.vmem [shape: bf16[16,32], index: 0, kind: input, shape index: {}]
  %s1 = inlined_call_operand.vmem [shape: bf16[32,256], index: 1, kind: input, shape index: {}]
  %s2 = inlined_call_operand.vmem [shape: f32[1,256], index: 2, kind: input, shape index: {}]
  %s3 = inlined_call_operand.vmem [shape: bf16[256,32], index: 3, kind: input, shape index: {}]
  %s4 = inlined_call_operand.vmem [shape: f32[1,32], index: 4, kind: input, shape index: {}]
  %s5 = inlined_call_operand.hbm [shape: f32[16,32], index: 5, kind: output, shape index: {}]
  %s6 = sld [smem:[#allocation0]]
  $region30: #{tpu_custom_call.1} parent=0
    _
  %s8 = ssub.s32 1, %s6
  %s9 = scalar_select 0, %s8, %s6
  $region1: #{tpu_custom_call.1} parent=0
    #allocation2 [shape = 'u8[8192]{0}', space=vmem, size = 0x2000, scoped, tag = 'output window, operand 0, single buffered']
    #allocation3 [shape = 's32[1]{0}', space=sflag, size = 0x4, scoped, tag = 'scoped memory for tpu_custom_call.1']
    %10 = vsyncpa [#allocation3], 0
    // Predicated region
    $region2: #{tpu_custom_call.1} parent=1 // pred_check
      _
    $region3: #{tpu_custom_call.1} parent=1 // pred_check_branch
      %12 = sbr.rel (0) target = $region5
    $region4: #{tpu_custom_call.1} parent=1 // pred_region
      _
    $region5: #{tpu_custom_call.1} parent=1 // pred_fallthru
      _
    // Predicated region
    $region6: #{tpu_custom_call.1} parent=1 // pred_check
      _
    $region7: #{tpu_custom_call.1} parent=1 // pred_check_branch
      %14 = sbr.rel (0) target = $region9
    $region8: #{tpu_custom_call.1} parent=1 // pred_region
      _
    $region9: #{tpu_custom_call.1} parent=1 // pred_fallthru
      _
    // Predicated region
    $region10: #{tpu_custom_call.1} parent=1 // pred_check
      _
    $region11: #{tpu_custom_call.1} parent=1 // pred_check_branch
      %16 = sbr.rel (0) target = $region13
    $region12: #{tpu_custom_call.1} parent=1 // pred_region
      _
    $region13: #{tpu_custom_call.1} parent=1 // pred_fallthru
      _
    // Predicated region
    $region14: #{tpu_custom_call.1} parent=1 // pred_check
      _
    $region15: #{tpu_custom_call.1} parent=1 // pred_check_branch
      %18 = sbr.rel (0) target = $region17
    $region16: #{tpu_custom_call.1} parent=1 // pred_region
      _
    $region17: #{tpu_custom_call.1} parent=1 // pred_fallthru
      _
    // Predicated region
    $region18: #{tpu_custom_call.1} parent=1 // pred_check
      _
    $region19: #{tpu_custom_call.1} parent=1 // pred_check_branch
      %20 = sbr.rel (0) target = $region21
    $region20: #{tpu_custom_call.1} parent=1 // pred_region
      _
    $region21: #{tpu_custom_call.1} parent=1 // pred_fallthru
      _
    %v22 = vld [vmem:[%s0] sm:$0xf]
    %v23 = vld [vmem:[%s0 + $0x4] sm:$0xf]
    %v24 = vld [vmem:[%s1] sm:$0xff]
    %v25 = vld [vmem:[%s1 + $0x8] sm:$0xff]
    %v26 = vld [vmem:[%s1 + $0x10] sm:$0xff]
    %v27 = vld [vmem:[%s1 + $0x18] sm:$0xff]
    %v28 = vld [vmem:[%s2] sm:$0x3]
    %v30 = vlaneseq
    %v31 = vshrl.u32 %v30, 7
    %v32 = vsub.s32 0, %v31
    %v33 = vrot.slane %v28, %v32
    %v34 = vlaneseq
    %v35 = vshrl.u32 %v34, 7
    %v36 = vsub.s32 1, %v35
    %v37 = vrot.slane %v28, %v36
    %v42 = vunpack.c.l.b16 %v22
    %v43 = vunpack.c.l.b16 %v23
    %v44 = vpack.c.b16 %v43, %v42
    %v49 = vunpack.c.l.b16 %v24
    %v50 = vunpack.c.h.b16 %v24
    %v51 = vunpack.c.l.b16 %v25
    %v52 = vunpack.c.h.b16 %v25
    %v53 = vunpack.c.l.b16 %v26
    %v54 = vunpack.c.h.b16 %v26
    %v55 = vunpack.c.l.b16 %v27
    %v56 = vunpack.c.h.b16 %v27
    %v57 = vpack.c.b16 %v51, %v49
    %v58 = vpack.c.b16 %v52, %v50
    %v59 = vpack.c.b16 %v55, %v53
    %v60 = vpack.c.b16 %v56, %v54
    %vm65 = vcmask 261120
    %v67 = vsel %vm65, %v44, 0
    %69 = vmatprep.subr.bf16.mxu0 0
    %70 = vmatpush1.bf16.msra.mxu0 0
    %71 = vmatprep.subr.bf16.mxu0 0
    %72 = vmatpush1.bf16.msra.mxu0 0
    %73 = vmatprep.subr.bf16.mxu0 0
    %74 = vmatpush1.bf16.msra.mxu0 0
    %75 = vmatprep.subr.bf16.mxu0 0
    %76 = vmatpush1.bf16.msra.mxu0 0
    %77 = vmatprep.subr.bf16.mxu0 0
    %78 = vmatpush1.bf16.msra.mxu0 0
    %79 = vmatprep.subr.bf16.mxu0 0
    %80 = vmatpush1.bf16.msra.mxu0 0
    %81 = vmatprep.subr.bf16.mxu0 %v60
    %82 = vmatpush1.bf16.msra.mxu0 %v59
    %83 = vmatprep.subr.bf16.mxu0 %v58
    %84 = vmatpush1.bf16.msra.mxu0 %v57
    %85 = vmatprep.subr.bf16.mxu0 0
    %86 = vmatpush2.bf16.msra.mxu0 0
    %87 = vmatprep.subr.bf16.mxu0 0
    %88 = vmatpush2.bf16.msra.mxu0 0
    %89 = vmatprep.subr.bf16.mxu0 0
    %90 = vmatpush2.bf16.msra.mxu0 0
    %91 = vmatprep.subr.bf16.mxu0 0
    %92 = vmatpush2.bf16.msra.mxu0 0
    %93 = vmatprep.subr.bf16.mxu0 0
    %94 = vmatpush2.bf16.msra.mxu0 0
    %95 = vmatprep.subr.bf16.mxu0 0
    %96 = vmatpush2.bf16.msra.mxu0 0
    %97 = vmatprep.subr.bf16.mxu0 0
    %98 = vmatpush2.bf16.msra.mxu0 0
    %99 = vmatprep.subr.bf16.mxu0 0
    %100 = vmatpush2.bf16.msra.mxu0 0
    %101 = vmatprep.mubr.bf16.mxu0 0
    %102 = vmatmul.mubr.bf16.gmra.mxu0 %v67
    %v103 = vpop.f32.mrf.mxu0
    %v104 = vadd.f32 %v33, %v103
    %v105 = vpop.f32.mrf.mxu0
    %v106 = vadd.f32 %v37, %v105
    %v107 = vpop.f32.mrf.mxu0
    %v108 = vadd.f32 %v33, %v107
    %v109 = vpop.f32.mrf.mxu0
    %v110 = vadd.f32 %v37, %v109
    %111 = vdwg.mxu0
    %v112 = vmul.f32 %v104, %v104
    %v113 = vmul.f32 %v106, %v106
    %v114 = vmul.f32 %v108, %v108
    %v115 = vmul.f32 %v110, %v110
    %v116 = vmul.f32 %v104, %v112
    %v117 = vmul.f32 %v106, %v113
    %v118 = vmul.f32 %v108, %v114
    %v119 = vmul.f32 %v110, %v115
    %v120 = vmul.f32 %v116, 0.044715
    %v121 = vmul.f32 %v117, 0.044715
    %v122 = vmul.f32 %v118, 0.044715
    %v123 = vmul.f32 %v119, 0.044715
    %v124 = vadd.f32 %v104, %v120
    %v125 = vadd.f32 %v106, %v121
    %v126 = vadd.f32 %v108, %v122
    %v127 = vadd.f32 %v110, %v123
    %v128 = vmul.f32 %v124, 0.7978846
    %v129 = vmul.f32 %v125, 0.7978846
    %v130 = vmul.f32 %v126, 0.7978846
    %v131 = vmul.f32 %v127, 0.7978846
    %v132 = vtanh.pop %v128
    %v133 = vtanh.pop %v129
    %v134 = vtanh.pop %v130
    %v135 = vtanh.pop %v131
    %v136 = vadd.f32 %v132, 1.0
    %v137 = vadd.f32 %v133, 1.0
    %v138 = vadd.f32 %v134, 1.0
    %v139 = vadd.f32 %v135, 1.0
    %v140 = vmul.f32 %v136, 0.5
    %v141 = vmul.f32 %v137, 0.5
    %v142 = vmul.f32 %v138, 0.5
    %v143 = vmul.f32 %v139, 0.5
    %v144 = vmul.f32 %v104, %v140
    %v145 = vmul.f32 %v106, %v141
    %v146 = vmul.f32 %v108, %v142
    %v147 = vmul.f32 %v110, %v143
    %v148 = vpack.c.bf16 %v146, %v144
    %v149 = vpack.c.bf16 %v147, %v145
    %v150 = vld [vmem:[%s3] sm:$0xf]
    %v151 = vld [vmem:[%s3 + $0x4] sm:$0xf]
    %v152 = vld [vmem:[%s3 + $0x8] sm:$0xf]
    %v153 = vld [vmem:[%s3 + $0xc] sm:$0xf]
    %v154 = vld [vmem:[%s3 + $0x10] sm:$0xf]
    %v155 = vld [vmem:[%s3 + $0x14] sm:$0xf]
    %v156 = vld [vmem:[%s3 + $0x18] sm:$0xf]
    %v157 = vld [vmem:[%s3 + $0x1c] sm:$0xf]
    %v158 = vld [vmem:[%s3 + $0x20] sm:$0xf]
    %v159 = vld [vmem:[%s3 + $0x24] sm:$0xf]
    %v160 = vld [vmem:[%s3 + $0x28] sm:$0xf]
    %v161 = vld [vmem:[%s3 + $0x2c] sm:$0xf]
    %v162 = vld [vmem:[%s3 + $0x30] sm:$0xf]
    %v163 = vld [vmem:[%s3 + $0x34] sm:$0xf]
    %v164 = vld [vmem:[%s3 + $0x38] sm:$0xf]
    %v165 = vld [vmem:[%s3 + $0x3c] sm:$0xf]
    %v166 = vld [vmem:[%s3 + $0x40] sm:$0xf]
    %v167 = vld [vmem:[%s3 + $0x44] sm:$0xf]
    %v168 = vld [vmem:[%s3 + $0x48] sm:$0xf]
    %v169 = vld [vmem:[%s3 + $0x4c] sm:$0xf]
    %v170 = vld [vmem:[%s3 + $0x50] sm:$0xf]
    %v171 = vld [vmem:[%s3 + $0x54] sm:$0xf]
    %v172 = vld [vmem:[%s3 + $0x58] sm:$0xf]
    %v173 = vld [vmem:[%s3 + $0x5c] sm:$0xf]
    %v174 = vld [vmem:[%s3 + $0x60] sm:$0xf]
    %v175 = vld [vmem:[%s3 + $0x64] sm:$0xf]
    %v176 = vld [vmem:[%s3 + $0x68] sm:$0xf]
    %v177 = vld [vmem:[%s3 + $0x6c] sm:$0xf]
    %v178 = vld [vmem:[%s3 + $0x70] sm:$0xf]
    %v179 = vld [vmem:[%s3 + $0x74] sm:$0xf]
    %v180 = vld [vmem:[%s3 + $0x78] sm:$0xf]
    %v181 = vld [vmem:[%s3 + $0x7c] sm:$0xf]
    %v182 = vld [vmem:[%s4] sm:$0x1]
    %v184 = vlaneseq
    %v185 = vshrl.u32 %v184, 7
    %v186 = vsub.s32 0, %v185
    %v187 = vrot.slane %v182, %v186
    %v221 = vunpack.c.l.b16 %v150
    %v222 = vunpack.c.l.b16 %v151
    %v223 = vunpack.c.l.b16 %v152
    %v224 = vunpack.c.l.b16 %v153
    %v225 = vunpack.c.l.b16 %v154
    %v226 = vunpack.c.l.b16 %v155
    %v227 = vunpack.c.l.b16 %v156
    %v228 = vunpack.c.l.b16 %v157
    %v229 = vunpack.c.l.b16 %v158
    %v230 = vunpack.c.l.b16 %v159
    %v231 = vunpack.c.l.b16 %v160
    %v232 = vunpack.c.l.b16 %v161
    %v233 = vunpack.c.l.b16 %v162
    %v234 = vunpack.c.l.b16 %v163
    %v235 = vunpack.c.l.b16 %v164
    %v236 = vunpack.c.l.b16 %v165
    %v237 = vunpack.c.l.b16 %v166
    %v238 = vunpack.c.l.b16 %v167
    %v239 = vunpack.c.l.b16 %v168
    %v240 = vunpack.c.l.b16 %v169
    %v241 = vunpack.c.l.b16 %v170
    %v242 = vunpack.c.l.b16 %v171
    %v243 = vunpack.c.l.b16 %v172
    %v244 = vunpack.c.l.b16 %v173
    %v245 = vunpack.c.l.b16 %v174
    %v246 = vunpack.c.l.b16 %v175
    %v247 = vunpack.c.l.b16 %v176
    %v248 = vunpack.c.l.b16 %v177
    %v249 = vunpack.c.l.b16 %v178
    %v250 = vunpack.c.l.b16 %v179
    %v251 = vunpack.c.l.b16 %v180
    %v252 = vunpack.c.l.b16 %v181
    %v253 = vpack.c.b16 %v222, %v221
    %v254 = vpack.c.b16 %v224, %v223
    %v255 = vpack.c.b16 %v226, %v225
    %v256 = vpack.c.b16 %v228, %v227
    %v257 = vpack.c.b16 %v230, %v229
    %v258 = vpack.c.b16 %v232, %v231
    %v259 = vpack.c.b16 %v234, %v233
    %v260 = vpack.c.b16 %v236, %v235
    %v261 = vpack.c.b16 %v238, %v237
    %v262 = vpack.c.b16 %v240, %v239
    %v263 = vpack.c.b16 %v242, %v241
    %v264 = vpack.c.b16 %v244, %v243
    %v265 = vpack.c.b16 %v246, %v245
    %v266 = vpack.c.b16 %v248, %v247
    %v267 = vpack.c.b16 %v250, %v249
    %v268 = vpack.c.b16 %v252, %v251
    %285 = vmatprep.subr.bf16.mxu0 0
    %286 = vmatpush1.bf16.msra.mxu0 %v260
    %287 = vmatprep.subr.bf16.mxu0 0
    %288 = vmatpush1.bf16.msra.mxu0 %v259
    %289 = vmatprep.subr.bf16.mxu0 0
    %290 = vmatpush1.bf16.msra.mxu0 %v258
    %291 = vmatprep.subr.bf16.mxu0 0
    %292 = vmatpush1.bf16.msra.mxu0 %v257
    %293 = vmatprep.subr.bf16.mxu0 0
    %294 = vmatpush1.bf16.msra.mxu0 %v256
    %295 = vmatprep.subr.bf16.mxu0 0
    %296 = vmatpush1.bf16.msra.mxu0 %v255
    %297 = vmatprep.subr.bf16.mxu0 0
    %298 = vmatpush1.bf16.msra.mxu0 %v254
    %299 = vmatprep.subr.bf16.mxu0 0
    %300 = vmatpush1.bf16.msra.mxu0 %v253
    %301 = vmatprep.subr.bf16.mxu0 0
    %302 = vmatpush2.bf16.msra.mxu0 %v268
    %303 = vmatprep.subr.bf16.mxu0 0
    %304 = vmatpush2.bf16.msra.mxu0 %v267
    %305 = vmatprep.subr.bf16.mxu0 0
    %306 = vmatpush2.bf16.msra.mxu0 %v266
    %307 = vmatprep.subr.bf16.mxu0 0
    %308 = vmatpush2.bf16.msra.mxu0 %v265
    %309 = vmatprep.subr.bf16.mxu0 0
    %310 = vmatpush2.bf16.msra.mxu0 %v264
    %311 = vmatprep.subr.bf16.mxu0 0
    %312 = vmatpush2.bf16.msra.mxu0 %v263
    %313 = vmatprep.subr.bf16.mxu0 0
    %314 = vmatpush2.bf16.msra.mxu0 %v262
    %315 = vmatprep.subr.bf16.mxu0 0
    %316 = vmatpush2.bf16.msra.mxu0 %v261
    %317 = vmatprep.mubr.bf16.mxu0 %v149
    %318 = vmatmul.mubr.bf16.gmra.mxu0 %v148
    %v319 = vpop.f32.mrf.mxu0
    %v320 = vadd.f32 %v187, %v319
    %v321 = vpop.f32.mrf.mxu0
    %v322 = vpop.f32.mrf.mxu0
    %v323 = vadd.f32 %v187, %v322
    %v324 = vpop.f32.mrf.mxu0
    %325 = vdwg.mxu0
    %326 = vst.msk [vmem:[#allocation2] sm:$0xff] %vm65, %v320
    %327 = vst.msk [vmem:[#allocation2 + $0x8] sm:$0xff] %vm65, %v323
    // Predicated region
    $region22: #{tpu_custom_call.1} parent=1 // pred_check
      _
    $region23: #{tpu_custom_call.1} parent=1 // pred_check_branch
      %329 = sbr.rel (0) target = $region25
    $region24: #{tpu_custom_call.1} parent=1 // pred_region
      %s331 = ssub.s32 256, 256
      %332 = vsyncadd [#allocation3], %s331
      %s333 = sshll.u32 [#allocation2], 4
      %s334 = int_to_ptr.vmem [resolvable:$true] %s333
      %339 = dma.vmem_to_hbm [thread:$0]  %s334, 256, %s5, [#allocation3], 128, 128, 8
    $region25: #{tpu_custom_call.1} parent=1 // pred_fallthru
      _
    // Predicated region
    $region26: #{tpu_custom_call.1} parent=1 // pred_check
      _
    $region27: #{tpu_custom_call.1} parent=1 // pred_check_branch
      %341 = sbr.rel (0) target = $region29
    $region28: #{tpu_custom_call.1} parent=1 // pred_region
      %342 = dma.done [#allocation3], 256
    $region29: #{tpu_custom_call.1} parent=1 // pred_fallthru
      _
    %343 = vsyncpa [#allocation3], 1

</llo_original>
